<compile_context>
chip_gen: v7x
topology: tpu7x:2x2x1
jax: 0.10.0
libtpu: 0.0.40
codegen_flags: <defaults>
</compile_context>

<pallas_src>
import jax
import jax.numpy as jnp
from jax.experimental import pallas as pl
from jax.experimental.pallas import tpu as pltpu


def _no_attention_kernel(lens_ref, enc_ref, c_ref, acc_ref):
    # lens_ref : VMEM (Bt, 1)  int32   -- valid lengths for this batch block
    # enc_ref  : VMEM (Bt, tT, tD)     -- encoder-output tile
    # c_ref    : VMEM (Bt, tD)         -- context output (resident across t)
    # acc_ref  : VMEM (Bt, tD) f32     -- running masked sum (scratch)
    t = pl.program_id(2)
    Bt, tT, _ = enc_ref.shape

    @pl.when(t == 0)
    def _():
        acc_ref[...] = jnp.zeros_like(acc_ref)

    # Time mask, built directly in (Bt, tT, 1) (sublane) orientation so no
    # lane<->sublane relayout is needed before broadcasting over the D lanes.
    t_idx = t * tT + jax.lax.broadcasted_iota(jnp.int32, (Bt, tT, 1), 1)
    mask = t_idx < lens_ref[...][:, :, None]                    # (Bt, tT, 1)

    # Masked select + sublane-axis sum; the 1/len scale is deferred to the
    # finalize step so the inner loop is pure select+add on the VPU.
    enc = enc_ref[...].astype(jnp.float32)                      # (Bt, tT, tD)
    acc_ref[...] += jnp.sum(jnp.where(mask, enc, 0.0), axis=1)  # (Bt, tD)

    @pl.when(t == pl.num_programs(2) - 1)
    def _():
        # Mean over valid frames.  len==0 is guarded (the PyTorch reference
        # would produce NaN there); identical for all valid inputs.
        len_f = jnp.maximum(lens_ref[...].astype(jnp.float32), 1.0)  # (Bt, 1)
        c_ref[...] = (acc_ref[...] * (1.0 / len_f)).astype(c_ref.dtype)


def _choose_tiles(B, T, D, itemsize, target_bytes):
    """Pick (Bt, tT, tD) tile sizes that respect the (8,128) block rules and
    keep the (double-buffered) encoder block around `target_bytes`."""
    # Batch tile: keep the (Bt, tD) output block sublane-dense
    # (block dim must be a multiple of 8 or equal to the full dim).
    Bt = 8 if (B > 8 and B % 8 == 0) else B

    # D tile: full D unless D is a multiple of 128 that we can split; when the
    # batch axis has only one block, force >=2 D tiles so the "parallel" D
    # axis carries real work (v7x has 2 TensorCores).
    if D % 128 == 0 and D >= 256:
        d_opts = [d for d in range(128, D + 1, 128) if D % d == 0]
        if B // Bt == 1 and len(d_opts) > 1:
            d_opts = [d for d in d_opts if d < D]
    else:
        d_opts = [D]

    # T tile: divisors of T that are multiples of 8 (or full T).
    if T % 8 == 0 and T > 8:
        t_opts = [t for t in range(8, T + 1, 8) if T % t == 0]
    else:
        t_opts = [T]

    best, best_bytes = None, -1
    for tD in d_opts:
        for tT in t_opts:
            blk = Bt * tT * tD * itemsize
            if blk <= target_bytes and blk > best_bytes:
                best, best_bytes = (tT, tD), blk
    if best is None:  # nothing fits the target; fall back to smallest tiles
        best = (min(t_opts), min(d_opts))
    return Bt, best[0], best[1]


def no_attention_forward(encoder_outputs, encoder_output_lens, dec_z=None,
                         att_prev=None, *, block_target_bytes=2 * 1024 * 1024):
    """Pallas implementation of NoAttention.forward (att_prev=None path).

    encoder_outputs:     (B, T, D) float32 / bfloat16
    encoder_output_lens: (B,)      int
    returns (c, att_prev) with shapes (B, D), (B, T)
    """
    del dec_z, att_prev  # unused on the first decoding step, matching module
    B, T, D = encoder_outputs.shape
    lens = encoder_output_lens.astype(jnp.int32)
    itemsize = jnp.dtype(encoder_outputs.dtype).itemsize

    Bt, tT, tD = _choose_tiles(B, T, D, itemsize, block_target_bytes)
    grid = (B // Bt, D // tD, T // tT)

    lens_2d = lens.reshape(B, 1)

    c = pl.pallas_call(
        _no_attention_kernel,
        out_shape=jax.ShapeDtypeStruct((B, D), encoder_outputs.dtype),
        grid_spec=pltpu.PrefetchScalarGridSpec(
            num_scalar_prefetch=0,
            grid=grid,
            in_specs=[
                pl.BlockSpec((Bt, 1), lambda b, d, t: (b, 0)),
                pl.BlockSpec((Bt, tT, tD), lambda b, d, t: (b, t, d)),
            ],
            out_specs=pl.BlockSpec((Bt, tD), lambda b, d, t: (b, d)),
            scratch_shapes=[pltpu.VMEM((Bt, tD), jnp.float32)],
        ),
        compiler_params=pltpu.CompilerParams(
            dimension_semantics=("parallel", "parallel", "arbitrary")),
    )(lens_2d, encoder_outputs)

    # att_prev is tiny (B*T); compute it in plain JAX (fused by XLA) instead
    # of adding a second output DMA stream / partial-sublane store per step.
    t_idx = jnp.arange(T, dtype=jnp.int32)[None, :]
    lens_f = jnp.maximum(lens.astype(jnp.float32), 1.0)[:, None]
    att = ((t_idx < lens[:, None]).astype(jnp.float32) / lens_f)
    att = att.astype(encoder_outputs.dtype)
    return c, att


def _reference(encoder_outputs, lens):
    B, T, D = encoder_outputs.shape
    t_idx = jnp.arange(T)[None, :]
    mask = (t_idx < lens[:, None]).astype(jnp.float32)
    att = mask / lens[:, None].astype(jnp.float32)
    c = jnp.sum(encoder_outputs.astype(jnp.float32) * att[:, :, None], axis=1)
    return c.astype(encoder_outputs.dtype), att.astype(encoder_outputs.dtype)


def _check(enc, lens, **kw):
    c, att = no_attention_forward(enc, lens, None, None, **kw)
    c, att = jax.block_until_ready((c, att))
    c_ref, att_ref = _reference(enc, lens)
    assert jnp.allclose(c, c_ref, atol=1e-5, rtol=1e-5), "context mismatch"
    assert jnp.allclose(att, att_ref, atol=1e-6, rtol=1e-6), "att mismatch"


if __name__ == "__main__":
    key = jax.random.PRNGKey(0)

    # Primary small shape consistent with the module: B=2, T=8, D=32.
    B, T, D = 2, 8, 32
    enc = jax.random.normal(key, (B, T, D), dtype=jnp.float32)
    lens = jnp.array([8, 5], dtype=jnp.int32)
    _check(enc, lens)

    # Exercise the T-tiled accumulator path (2 time tiles, lens crossing and
    # fully masking a tile) with a tiny per-step block target.
    k1, k2 = jax.random.split(key)
    enc_t = jax.random.normal(k1, (2, 64, 32), dtype=jnp.float32)
    lens_t = jnp.array([50, 20], dtype=jnp.int32)
    _check(enc_t, lens_t, block_target_bytes=8 * 1024)

    # Exercise the D-split (parallel hidden axis) path.
    enc_d = jax.random.normal(k2, (1, 64, 256), dtype=jnp.float32)
    lens_d = jnp.array([37], dtype=jnp.int32)
    _check(enc_d, lens_d, block_target_bytes=64 * 1024)

    print("KERNEL_OK")
</pallas_src>

<mosaic_0001>
module attributes {stable_mosaic.version = 11 : i64} {
  func.func @_no_attention_kernel(%arg0: i32, %arg1: i32, %arg2: i32, %arg3: memref<2x1xi32, #tpu.memory_space<vmem>>, %arg4: memref<2x8x32xf32, #tpu.memory_space<vmem>>, %arg5: memref<2x32xf32, #tpu.memory_space<vmem>>, %arg6: memref<2x32xf32, #tpu.memory_space<vmem>>) attributes {dimension_semantics = [#tpu.dimension_semantics<parallel>, #tpu.dimension_semantics<parallel>, #tpu.dimension_semantics<arbitrary>], iteration_bounds = array<i64: 1, 1, 1>, scalar_prefetch = 0 : i64, scratch_operands = 1 : i64, tpu.core_type = #tpu.core_type<tc>, window_params = [{transform_indices = @transform_0, window_bounds = array<i64: 2, 1>}, {transform_indices = @transform_1, window_bounds = array<i64: 2, 8, 32>}, {transform_indices = @transform_2, window_bounds = array<i64: 2, 32>}]} {
    %c0_i32 = arith.constant 0 : i32
    %0 = arith.cmpi eq, %arg2, %c0_i32 : i32
    %1 = arith.extui %0 : i1 to i32
    %c0_i32_0 = arith.constant 0 : i32
    %2 = arith.cmpi ne, %1, %c0_i32_0 : i32
    scf.if %2 {
      %cst_12 = arith.constant 0.000000e+00 : f32
      %23 = vector.broadcast %cst_12 : f32 to vector<2x32xf32>
      %c0_13 = arith.constant 0 : index
      %c0_14 = arith.constant 0 : index
      %24 = vector.load %arg6[%c0_13, %c0_14] : memref<2x32xf32, #tpu.memory_space<vmem>>, vector<2x32xf32>
      tpu.vector_store %arg6[%c0_13, %c0_14], %23 {strides = array<i32>} : memref<2x32xf32, #tpu.memory_space<vmem>>, vector<2x32xf32>,
    } else {
    }
    %c8_i32 = arith.constant 8 : i32
    %3 = arith.muli %arg2, %c8_i32 : i32
    %4 = tpu.iota {dimensions = array<i32: 1>} : vector<2x8x1xi32>
    %5 = vector.broadcast %3 : i32 to vector<2x8x1xi32>
    %6 = arith.addi %5, %4 : vector<2x8x1xi32>
    %c0 = arith.constant 0 : index
    %c0_1 = arith.constant 0 : index
    %7 = vector.load %arg3[%c0, %c0_1] : memref<2x1xi32, #tpu.memory_space<vmem>>, vector<2x1xi32>
    %8 = vector.shape_cast %7 : vector<2x1xi32> to vector<2x1x1xi32>
    %9 = vector.broadcast %8 : vector<2x1x1xi32> to vector<2x8x1xi32>
    %10 = arith.cmpi slt, %6, %9 : vector<2x8x1xi32>
    %c0_2 = arith.constant 0 : index
    %c0_3 = arith.constant 0 : index
    %c0_4 = arith.constant 0 : index
    %11 = vector.load %arg4[%c0_2, %c0_3, %c0_4] : memref<2x8x32xf32, #tpu.memory_space<vmem>>, vector<2x8x32xf32>
    %c0_5 = arith.constant 0 : index
    %c0_6 = arith.constant 0 : index
    %12 = vector.load %arg6[%c0_5, %c0_6] : memref<2x32xf32, #tpu.memory_space<vmem>>, vector<2x32xf32>
    %cst = arith.constant 0.000000e+00 : f32
    %13 = vector.shape_cast %10 : vector<2x8x1xi1> to vector<2x8x1xi1>
    %14 = vector.broadcast %13 : vector<2x8x1xi1> to vector<2x8x32xi1>
    %15 = vector.broadcast %cst : f32 to vector<2x8x32xf32>
    %16 = arith.select %14, %11, %15 : vector<2x8x32xi1>, vector<2x8x32xf32>
    %cst_7 = arith.constant dense<0.000000e+00> : vector<2x32xf32>
    %17 = vector.multi_reduction <add>, %16, %cst_7 [1] : vector<2x8x32xf32> to vector<2x32xf32>
    %18 = arith.addf %12, %17 : vector<2x32xf32>
    %c0_8 = arith.constant 0 : index
    %c0_9 = arith.constant 0 : index
    %19 = vector.load %arg6[%c0_8, %c0_9] : memref<2x32xf32, #tpu.memory_space<vmem>>, vector<2x32xf32>
    tpu.vector_store %arg6[%c0_8, %c0_9], %18 {strides = array<i32>} : memref<2x32xf32, #tpu.memory_space<vmem>>, vector<2x32xf32>,
    %c0_i32_10 = arith.constant 0 : i32
    %20 = arith.cmpi eq, %arg2, %c0_i32_10 : i32
    %21 = arith.extui %20 : i1 to i32
    %c0_i32_11 = arith.constant 0 : i32
    %22 = arith.cmpi ne, %21, %c0_i32_11 : i32
    scf.if %22 {
      %c0_12 = arith.constant 0 : index
      %c0_13 = arith.constant 0 : index
      %23 = vector.load %arg3[%c0_12, %c0_13] : memref<2x1xi32, #tpu.memory_space<vmem>>, vector<2x1xi32>
      %24 = arith.sitofp %23 : vector<2x1xi32> to vector<2x1xf32>
      %cst_14 = arith.constant 1.000000e+00 : f32
      %25 = vector.broadcast %cst_14 : f32 to vector<2x1xf32>
      %26 = arith.maximumf %24, %25 : vector<2x1xf32>
      %c0_15 = arith.constant 0 : index
      %c0_16 = arith.constant 0 : index
      %27 = vector.load %arg6[%c0_15, %c0_16] : memref<2x32xf32, #tpu.memory_space<vmem>>, vector<2x32xf32>
      %cst_17 = arith.constant 1.000000e+00 : f32
      %28 = vector.broadcast %cst_17 : f32 to vector<2x1xf32>
      %29 = arith.divf %28, %26 : vector<2x1xf32>
      %30 = vector.broadcast %29 : vector<2x1xf32> to vector<2x32xf32>
      %31 = arith.mulf %27, %30 : vector<2x32xf32>
      %c0_18 = arith.constant 0 : index
      %c0_19 = arith.constant 0 : index
      %32 = vector.load %arg5[%c0_18, %c0_19] : memref<2x32xf32, #tpu.memory_space<vmem>>, vector<2x32xf32>
      tpu.vector_store %arg5[%c0_18, %c0_19], %31 {strides = array<i32>} : memref<2x32xf32, #tpu.memory_space<vmem>>, vector<2x32xf32>,
    } else {
    }
    return
  }
  func.func @transform_0(%arg0: i32, %arg1: i32, %arg2: i32) -> (i32, i32) {
    %c0_i32 = arith.constant 0 : i32
    %c0_i32_0 = arith.constant 0 : i32
    return %arg0, %c0_i32 : i32, i32
  }
  func.func @transform_1(%arg0: i32, %arg1: i32, %arg2: i32) -> (i32, i32, i32) {
    %c0_i32 = arith.constant 0 : i32
    return %arg0, %arg2, %arg1 : i32, i32, i32
  }
  func.func @transform_2(%arg0: i32, %arg1: i32, %arg2: i32) -> (i32, i32) {
    %c0_i32 = arith.constant 0 : i32
    return %arg0, %arg1 : i32, i32
  }
}

</mosaic_0001>

<llo_original>
// kernel: tpu_custom_call.1
$region0: #{tpu_custom_call.1}
  #allocation0 [shape = 'u32[]', space=smem, size = 0x4, offset = 0x4, fixed_abs, tag = 'smem constant byte address 0x4 - core index']
  #allocation1 [shape = 'u32[144,128]{1,0:T(1,128)}', space=vmem, size = 0x12000, scoped, tag = 'internal scratch']
  #allocation2 [shape = 'f32[2,32]{1,0:T(2,128)}', space=vmem, size = 0x400, scoped, tag = 'scratch operand']
  %s0 = inlined_call_operand.vmem [shape: s32[2,1], index: 0, kind: input, shape index: {}]
  %s1 = inlined_call_operand.hbm [shape: f32[2,8,32], index: 1, kind: input, shape index: {}]
  %s2 = inlined_call_operand.hbm [shape: f32[2,32], index: 2, kind: output, shape index: {}]
  %s3 = sld [smem:[#allocation0]]
  $region30: #{tpu_custom_call.1} parent=0
    _
  %s5 = ssub.s32 1, %s3
  %s6 = scalar_select 0, %s5, %s3
  $region1: #{tpu_custom_call.1} parent=0
    #allocation3 [shape = 'u8[8192]{0}', space=vmem, size = 0x2000, scoped, tag = 'input window, operand 1, single buffered']
    #allocation4 [shape = 's32[1]{0}', space=sflag, size = 0x4, scoped, tag = 'scoped memory for tpu_custom_call.1']
    #allocation5 [shape = 's32[1]{0}', space=sflag, size = 0x4, scoped, tag = 'scoped memory for tpu_custom_call.1']
    #allocation6 [shape = 'u8[1024]{0}', space=vmem, size = 0x400, scoped, tag = 'output window, operand 0, single buffered']
    %7 = vsyncpa [#allocation4], 0
    %8 = vsyncpa [#allocation5], 0
    // Predicated region
    $region2: #{tpu_custom_call.1} parent=1 // pred_check
      _
    $region3: #{tpu_custom_call.1} parent=1 // pred_check_branch
      %10 = sbr.rel (0) target = $region5
    $region4: #{tpu_custom_call.1} parent=1 // pred_region
      _
    $region5: #{tpu_custom_call.1} parent=1 // pred_fallthru
      _
    // Predicated region
    $region6: #{tpu_custom_call.1} parent=1 // pred_check
      _
    $region7: #{tpu_custom_call.1} parent=1 // pred_check_branch
      %12 = sbr.rel (0) target = $region9
    $region8: #{tpu_custom_call.1} parent=1 // pred_region
      %s14 = ssub.s32 256, 256
      %15 = vsyncadd [#allocation4], %s14
      %s16 = sshll.u32 [#allocation3], 4
      %s17 = int_to_ptr.vmem [resolvable:$true] %s16
      %22 = dma.hbm_to_vmem [thread:$0]  %s1, 256, %s17, [#allocation4], 128, 128, 8
    $region9: #{tpu_custom_call.1} parent=1 // pred_fallthru
      _
    // Predicated region
    $region10: #{tpu_custom_call.1} parent=1 // pred_check
      _
    $region11: #{tpu_custom_call.1} parent=1 // pred_check_branch
      %24 = sbr.rel (0) target = $region13
    $region12: #{tpu_custom_call.1} parent=1 // pred_region
      %25 = dma.done [#allocation4], 256
    $region13: #{tpu_custom_call.1} parent=1 // pred_fallthru
      _
    %p26 = scmp.eq.s32.totalorder 0, 0
    // Predicated region
    $region14: #{tpu_custom_call.1} parent=1 // pred_check
      %p27 = pneg %p26
    $region15: #{tpu_custom_call.1} parent=1 // pred_check_branch
      %29 = sbr.rel (%p27) target = $region17
    $region16: #{tpu_custom_call.1} parent=1 // pred_region
      %vm30 = vcmask 254976
      %31 = vst.msk [vmem:[#allocation2] sm:$0x3] %vm30, 0.0
    $region17: #{tpu_custom_call.1} parent=1 // pred_fallthru
      _
    %s32 = smul.u32 0, 8
    %v33 = vlaneseq
    %v34 = vshrl.u32 %v33, 7
    %v35 = vstv %s32
    %v36 = vadd.s32 %v35, %v34
    %v37 = vld [vmem:[%s0] sm:$0x3]
    %v39 = vunpack.c.l.s4 1966171168
    %v40 = vunpack.c.0.s8 %v39
    %v41 = vlaneseq
    %v42 = vshrl.u32 %v41, 7
    %v43 = vsub.s32 %v40, %v42
    %v44 = vrot.slane %v37, %v43
    %v45 = vcombine.high %v44, %v44
    %v47 = vunpack.c.l.s4 1966171168
    %v48 = vunpack.c.0.s8 %v47
    %v49 = vlaneseq
    %v50 = vshrl.u32 %v49, 7
    %v51 = vsub.s32 %v48, %v50
    %v52 = vrot.slane %v44, %v51
    %v54 = vunpack.c.l.s4 1966171168
    %v55 = vunpack.c.0.s8 %v54
    %v56 = vlaneseq
    %v57 = vshrl.u32 %v56, 7
    %v58 = vsub.s32 %v55, %v57
    %v59 = vrot.slane %v45, %v58
    %v60 = vlaneseq
    %v61 = vshrl.u32 %v60, 7
    %v62 = vsub.s32 0, %v61
    %v63 = vrot.slane %v52, %v62
    %v64 = vlaneseq
    %v65 = vshrl.u32 %v64, 7
    %v66 = vsub.s32 0, %v65
    %v67 = vrot.slane %v59, %v66
    %vm68 = vcmp.lt.s32.totalorder %v36, %v63
    %vm69 = vcmp.lt.s32.totalorder %v36, %v67
    %v70 = vld [vmem:[#allocation3] sm:$0xff]
    %v71 = vld [vmem:[#allocation3 + $0x8] sm:$0xff]
    %v72 = vld [vmem:[#allocation2] sm:$0x3]
    %v73 = vsel %vm68, 1, 0
    %v74 = vsel %vm69, 1, 0
    %75 = vset.pattern.permute.xlu0 0
    %76 = vperm.xlu0 %75, %v73
    %v77 = vpop.permute.xlu0 %76
    %78 = vset.pattern.permute.xlu0 0
    %79 = vperm.xlu0 %78, %v74
    %v80 = vpop.permute.xlu0 %79
    %vm81 = vcmp.eq.s32.totalorder %v77, 1
    %vm82 = vcmp.eq.s32.totalorder %v80, 1
    %v83 = vsel %vm81, %v70, 0.0
    %v84 = vsel %vm82, %v71, 0.0
    %vm85 = vcmask 261120
    %v86 = vsel %vm85, %v83, 0.0
    %v87 = vrot.slane %v86, 4
    %v88 = vadd.f32 %v86, %v87
    %v89 = vrot.slane %v88, 2
    %v90 = vadd.f32 %v88, %v89
    %v91 = vrot.slane %v90, 1
    %v92 = vadd.f32 %v90, %v91
    %v93 = vsel %vm85, %v84, 0.0
    %v94 = vrot.slane %v93, 4
    %v95 = vadd.f32 %v93, %v94
    %v96 = vrot.slane %v95, 2
    %v97 = vadd.f32 %v95, %v96
    %v98 = vrot.slane %v97, 1
    %v99 = vadd.f32 %v97, %v98
    %vm102 = vcmask 1041409
    %v103 = vsel %vm102, %v99, %v92
    %v105 = vadd.f32 %v72, %v103
    %vm106 = vcmask 254976
    %107 = vst.msk [vmem:[#allocation2] sm:$0x3] %vm106, %v105
    // Predicated region
    $region18: #{tpu_custom_call.1} parent=1 // pred_check
      %p108 = pneg %p26
    $region19: #{tpu_custom_call.1} parent=1 // pred_check_branch
      %110 = sbr.rel (%p108) target = $region21
    $region20: #{tpu_custom_call.1} parent=1 // pred_region
      %v111 = vld [vmem:[%s0] sm:$0x3]
      %v112 = vcvt.s32.f32 %v111
      %v113 = vmax.f32 %v112, 1.0
      %v114 = vld [vmem:[#allocation2] sm:$0x3]
      %v115 = vrcp.pop %v113
      %v116 = vmul.f32 1.0, %v115
      %118 = vset.pattern.permute.xlu0 0
      %119 = vperm.xlu0 %118, %v116
      %v120 = vpop.permute.xlu0 %119
      %v122 = vmul.f32 %v114, %v120
      %123 = vst.msk [vmem:[#allocation6] sm:$0x3] %vm106, %v122
    $region21: #{tpu_custom_call.1} parent=1 // pred_fallthru
      _
    // Predicated region
    $region22: #{tpu_custom_call.1} parent=1 // pred_check
      _
    $region23: #{tpu_custom_call.1} parent=1 // pred_check_branch
      %125 = sbr.rel (0) target = $region25
    $region24: #{tpu_custom_call.1} parent=1 // pred_region
      %s127 = ssub.s32 32, 32
      %128 = vsyncadd [#allocation5], %s127
      %s130 = sshll.u32 [#allocation6], 4
      %s131 = int_to_ptr.vmem [resolvable:$true] %s130
      %133 = dma.vmem_to_hbm [thread:$0]  %s131, 32, %s2, [#allocation5]
    $region25: #{tpu_custom_call.1} parent=1 // pred_fallthru
      _
    // Predicated region
    $region26: #{tpu_custom_call.1} parent=1 // pred_check
      _
    $region27: #{tpu_custom_call.1} parent=1 // pred_check_branch
      %135 = sbr.rel (0) target = $region29
    $region28: #{tpu_custom_call.1} parent=1 // pred_region
      %136 = dma.done [#allocation5], 32
    $region29: #{tpu_custom_call.1} parent=1 // pred_fallthru
      _
    %137 = vsyncpa [#allocation4], 1
    %138 = vsyncpa [#allocation5], 1

</llo_original>
